<compile_context>
chip_gen: v5e
topology: v5e:2x2
jax: 0.10.0
libtpu: 0.0.40
codegen_flags: <defaults>
</compile_context>

<pallas_src>
import functools

import numpy as np
import jax
import jax.numpy as jnp
from jax.experimental import pallas as pl
from jax.experimental.pallas import tpu as pltpu


def _make_divisible(v, divisor, min_value=None):
    if min_value is None:
        min_value = divisor
    new_v = max(min_value, int(v + divisor / 2) // divisor * divisor)
    if new_v < 0.9 * v:
        new_v += divisor
    return new_v


def _build_index(c1, g_tuple, expansion):
    """Reproduces the channel-shuffle index built in DYShiftMax.__init__."""
    g = g_tuple[1]
    if g != 1 and expansion:
        g = c1 // g
    gc = c1 // g
    index = np.arange(c1).reshape(1, g, gc, 1, 1)
    index = np.concatenate([index[:, 1:], index[:, :1]], axis=1)        # group rotate
    index = np.concatenate([index[:, :, 1:], index[:, :, :1]], axis=2)  # in-group rotate
    return index.reshape(c1).astype(np.int32)


@functools.lru_cache(maxsize=1)
def _pltpu_roll_sign():
    """Detect pltpu.roll's rotation convention relative to jnp.roll.

    Returns +1 if pltpu.roll(x, s, axis) == jnp.roll(x, s, axis), -1 if it is the
    opposite rotation, and 0 if pltpu.roll can't be used (slice+concat fallback).
    """
    try:
        def probe(x_ref, o_ref):
            o_ref[...] = pltpu.roll(x_ref[...], 3, axis=1)

        x = jnp.broadcast_to(
            jnp.arange(8, dtype=jnp.int32)[None, :, None], (2, 8, 128))
        out = pl.pallas_call(
            probe, out_shape=jax.ShapeDtypeStruct((2, 8, 128), jnp.int32))(x)
        out = np.asarray(jax.device_get(out))
        xn = np.asarray(jax.device_get(x))
        if np.array_equal(out, np.roll(xn, 3, axis=1)):
            return 1
        if np.array_equal(out, np.roll(xn, -3, axis=1)):
            return -1
    except Exception:
        pass
    return 0


def _roll_ch(x, jshift, size, roll_sign):
    """jnp.roll(x, jshift, axis=1), as a single XLU rotate when possible."""
    if size <= 1 or jshift % size == 0:
        return x
    if roll_sign != 0:
        return pltpu.roll(x, (roll_sign * jshift) % size, axis=1)
    # Fallback: static slice + concat (equivalent to jnp.roll with static shift).
    s = jshift % size
    lo = jax.lax.slice_in_dim(x, size - s, size, axis=1)
    hi = jax.lax.slice_in_dim(x, 0, size - s, axis=1)
    return jnp.concatenate([lo, hi], axis=1)


def _vmem_capacity_bytes():
    try:
        info = pltpu.get_tpu_info()
        for name in ("vmem_capacity_bytes", "vmem_bytes", "vmem_size_bytes"):
            v = getattr(info, name, None)
            if v:
                return int(v)
    except Exception:
        pass
    return 64 * 1024 * 1024      # conservative default (v7x per-core physical)


def _choose_tb(B, C, HW, itemsize):
    """Batch elements per grid step + vmem limit, sized per TPU generation."""
    cap = _vmem_capacity_bytes()
    # ~48 MiB on v7x (64 MiB physical/core), 64 MiB on v5e/v6e (128 MiB physical).
    vmem_limit = min(int(cap * 0.75), 64 * 1024 * 1024)
    vmem_limit = max(vmem_limit, 16 * 1024 * 1024)
    budget = int(vmem_limit * 0.8)
    per_block = C * HW * itemsize
    # Live set: 2x input + 2x output double buffers + ~5-6 block-sized
    # temporaries (x, two rolls, x2, combine) -> ~12 blocks with headroom.
    tb = max(1, budget // max(12 * per_block, 1))
    tb = min(tb, B)
    if B >= 2:
        tb = min(tb, -(-B // 2))   # keep >= 2 grid steps (v7x megacore)
    return int(tb), int(vmem_limit)


def _dyshiftmax_kernel(x_ref, w1_ref, b1_ref, w2_ref, b2_ref, o_ref, *,
                       exp, c2, gc, hw, init_a, init_b, roll_sign):
    # x_ref, o_ref : (TB, C, HW)      HW = true H*W (tail stores are masked)
    # w1_ref : (C, squeeze)  b1_ref : (1, squeeze)
    # w2_ref : (squeeze, exp*c2)  b2_ref : (1, exp*c2)
    x = x_ref[...]                                   # big tile stays in input dtype
    _, C, _ = x.shape

    # ---- AdaptiveAvgPool2d(1): mean over spatial, in f32 ----
    y = jnp.sum(x, axis=-1, dtype=jnp.float32) * (1.0 / hw)             # (TB, C)

    # ---- fc: Linear -> ReLU -> Linear -> HSigmoid ; then (y - 0.5) * 4 ----
    h = jnp.dot(y, w1_ref[...], preferred_element_type=jnp.float32) + b1_ref[...]
    h = jnp.maximum(h, 0.0)
    z = jnp.dot(h, w2_ref[...], preferred_element_type=jnp.float32) + b2_ref[...]
    z = jnp.clip(z + 3.0, 0.0, 6.0) * (1.0 / 6.0)                        # HSigmoid
    z = (z - 0.5) * 4.0                                                  # (TB, exp*c2)

    # One lane->sublane relayout for all scale branches, then sublane slices.
    # NOTE: scales are cast to the input dtype (keeps the combine in-dtype); only
    # the f32 path is exercised by the tests below.
    zs = z.astype(x.dtype)[:, :, None]                                   # (TB, exp*c2, 1)
    a1 = zs[:, 0 * c2:1 * c2] + init_a[0]
    b1 = zs[:, 1 * c2:2 * c2] + init_b[0]

    # ---- in-kernel channel shuffle: out ch k=i*gc+j reads ((i+1)%g)*gc+((j+1)%gc)
    #   j <  gc-1 : x[(k + gc + 1) % C]
    #   j == gc-1 : x[(k + 1) % C]
    # => two sublane rotations + one select; no extra HBM traffic.
    rw = _roll_ch(x, -1, C, roll_sign)
    if gc == 1 or gc >= C:
        x2 = rw                          # rotation structure degenerates to one roll
    else:
        r1 = _roll_ch(x, -(gc + 1), C, roll_sign)
        ch = jax.lax.broadcasted_iota(jnp.int32, (C, 1), 0)
        x2 = jnp.where(ch % gc == gc - 1, rw, r1)

    # ---- shift-max combine (input dtype; scales broadcast across the lane axis) ----
    if exp == 4:
        # NOTE: a2 adds init_b[1] -- mirrors the provided PyTorch module verbatim.
        a2 = zs[:, 2 * c2:3 * c2] + init_b[1]
        b2 = zs[:, 3 * c2:4 * c2] + init_b[1]
        out = jnp.maximum(x * a1 + x2 * b1, x * a2 + x2 * b2)
    else:  # exp == 2
        out = x * a1 + x2 * b1

    o_ref[...] = out.astype(o_ref.dtype)


class DYShiftMaxPallas:
    def __init__(self, c1, c2, init_a=(0.0, 0.0), init_b=(0.0, 0.0),
                 act_relu=True, g=None, reduction=4, expansion=False, key=None):
        assert c1 == c2, "kernel assumes c2 == input channel count (MicroNet usage)"
        self.exp = 4 if act_relu else 2
        self.init_a = tuple(float(v) for v in init_a)
        self.init_b = tuple(float(v) for v in init_b)
        self.c1, self.c2 = c1, c2
        squeeze = _make_divisible(c1 // reduction, 4)

        # group structure of the static shuffle (matches the module __init__)
        geff = g[1]
        if geff != 1 and expansion:
            geff = c1 // geff
        self.g = geff
        self.gc = c1 // geff

        # sanity: roll decomposition used in-kernel == the gather index of the module
        idx = _build_index(c1, g, expansion)
        k = np.arange(c1)
        want = ((k // self.gc + 1) % self.g) * self.gc + ((k % self.gc + 1) % self.gc)
        assert np.array_equal(idx, want.astype(np.int32))
        self.index = jnp.asarray(idx)   # used only by the pure-JAX reference

        self.roll_sign = _pltpu_roll_sign()

        if key is None:
            key = jax.random.PRNGKey(0)
        k1, k2, k3, k4 = jax.random.split(key, 4)
        # Linear(c1, squeeze) / Linear(squeeze, c2*exp) -- stored pre-transposed.
        self.w1t = jax.random.normal(k1, (c1, squeeze), jnp.float32) * 0.2
        self.b1 = jax.random.normal(k2, (1, squeeze), jnp.float32) * 0.1
        self.w2t = jax.random.normal(k3, (squeeze, c2 * self.exp), jnp.float32) * 0.2
        self.b2 = jax.random.normal(k4, (1, c2 * self.exp), jnp.float32) * 0.1

    def __call__(self, x):
        # x: (B, C, H, W) NCHW
        B, C, H, W = x.shape
        assert C == self.c1
        HW = H * W
        xf = x.reshape(B, C, HW)                       # copy-free view, no padding

        tb, vmem_limit = _choose_tb(B, C, HW, xf.dtype.itemsize)
        grid = (pl.cdiv(B, tb),)                       # ragged boundary block is masked

        kernel = functools.partial(
            _dyshiftmax_kernel, exp=self.exp, c2=self.c2, gc=self.gc,
            hw=HW, init_a=self.init_a, init_b=self.init_b,
            roll_sign=self.roll_sign)

        out = pl.pallas_call(
            kernel,
            out_shape=jax.ShapeDtypeStruct((B, C, HW), x.dtype),
            grid=grid,
            in_specs=[
                pl.BlockSpec((tb, C, HW), lambda b: (b, 0, 0)),
                pl.BlockSpec(self.w1t.shape, lambda b: (0, 0)),
                pl.BlockSpec(self.b1.shape, lambda b: (0, 0)),
                pl.BlockSpec(self.w2t.shape, lambda b: (0, 0)),
                pl.BlockSpec(self.b2.shape, lambda b: (0, 0)),
            ],
            out_specs=pl.BlockSpec((tb, C, HW), lambda b: (b, 0, 0)),
            compiler_params=pltpu.CompilerParams(
                dimension_semantics=("parallel",),
                vmem_limit_bytes=vmem_limit),
        )(xf, self.w1t, self.b1, self.w2t, self.b2)

        return out.reshape(B, C, H, W)

    def reference(self, x):
        """Pure-JAX reference mirroring the provided PyTorch forward."""
        y = jnp.mean(x, axis=(2, 3))                              # (B, C)
        h = jnp.maximum(y @ self.w1t + self.b1, 0.0)
        z = h @ self.w2t + self.b2
        z = jnp.clip(z + 3.0, 0.0, 6.0) / 6.0
        y = (z - 0.5) * 4.0                                       # (B, c2*exp)
        x2 = x[:, self.index, :, :]
        c2 = self.c2
        if self.exp == 4:
            a1 = y[:, 0 * c2:1 * c2] + self.init_a[0]
            b1 = y[:, 1 * c2:2 * c2] + self.init_b[0]
            a2 = y[:, 2 * c2:3 * c2] + self.init_b[1]   # as in the provided module
            b2 = y[:, 3 * c2:4 * c2] + self.init_b[1]
            z1 = x * a1[:, :, None, None] + x2 * b1[:, :, None, None]
            z2 = x * a2[:, :, None, None] + x2 * b2[:, :, None, None]
            return jnp.maximum(z1, z2)
        else:
            a1 = y[:, 0 * c2:1 * c2] + self.init_a[0]
            b1 = y[:, 1 * c2:2 * c2] + self.init_b[0]
            return x * a1[:, :, None, None] + x2 * b1[:, :, None, None]


if __name__ == "__main__":
    key = jax.random.PRNGKey(0)
    kx, kx2, kp, kp2 = jax.random.split(key, 4)

    # ---- exp == 4 path (act_relu=True), grouped shuffle g=(1,2), B=2, HW=256 ----
    B, C, H, W = 2, 8, 16, 16
    x = jax.random.normal(kx, (B, C, H, W), jnp.float32)
    mod = DYShiftMaxPallas(c1=C, c2=C, init_a=[1.0, 0.5], init_b=[0.0, 0.5],
                           act_relu=True, g=(1, 2), reduction=4,
                           expansion=False, key=kp)
    out = mod(x)
    jax.block_until_ready(out)
    ref = mod.reference(x)
    assert out.shape == (B, C, H, W)
    assert jnp.allclose(out, ref, atol=1e-4, rtol=1e-4), "exp=4 mismatch vs reference"

    # ---- exp == 2 path (act_relu=False), gc==1 shuffle, ragged batch (B=3, TB=2),
    #      HW=100 (<128 and not a multiple of 128 -> masked tail stores, no pad) ----
    B2, H2, W2 = 3, 10, 10
    x2 = jax.random.normal(kx2, (B2, C, H2, W2), jnp.float32)
    mod2 = DYShiftMaxPallas(c1=C, c2=C, init_a=[1.0, 0.0], init_b=[0.0, 0.0],
                            act_relu=False, g=(1, 8), reduction=4,
                            expansion=False, key=kp2)
    out2 = mod2(x2)
    jax.block_until_ready(out2)
    ref2 = mod2.reference(x2)
    assert out2.shape == (B2, C, H2, W2)
    assert jnp.allclose(out2, ref2, atol=1e-4, rtol=1e-4), "exp=2 mismatch vs reference"

    print("KERNEL_OK")
</pallas_src>

<mosaic_0001>
module attributes {stable_mosaic.version = 11 : i64} {
  func.func @probe(%arg0: memref<2x8x128xi32, #tpu.memory_space<vmem>>, %arg1: memref<2x8x128xi32, #tpu.memory_space<vmem>>) attributes {dimension_semantics = [], scalar_prefetch = 0 : i64, scratch_operands = 0 : i64, tpu.core_type = #tpu.core_type<tc>} {
    %c0 = arith.constant 0 : index
    %c0_0 = arith.constant 0 : index
    %c0_1 = arith.constant 0 : index
    %0 = vector.load %arg0[%c0, %c0_0, %c0_1] : memref<2x8x128xi32, #tpu.memory_space<vmem>>, vector<2x8x128xi32>
    %c3_i32 = arith.constant 3 : i32
    %1 = tpu.dynamic_rotate %0 by %c3_i32 dim 1 : vector<2x8x128xi32>, i32 -> vector<2x8x128xi32>
    %c0_2 = arith.constant 0 : index
    %c0_3 = arith.constant 0 : index
    %c0_4 = arith.constant 0 : index
    %2 = vector.load %arg1[%c0_2, %c0_3, %c0_4] : memref<2x8x128xi32, #tpu.memory_space<vmem>>, vector<2x8x128xi32>
    tpu.vector_store %arg1[%c0_2, %c0_3, %c0_4], %1 {strides = array<i32>} : memref<2x8x128xi32, #tpu.memory_space<vmem>>, vector<2x8x128xi32>,
    return
  }
}

module attributes {stable_mosaic.version = 11 : i64} {
  func.func @_dyshiftmax_kernel(%arg0: i32, %arg1: memref<1x8x256xf32, #tpu.memory_space<vmem>>, %arg2: memref<8x4xf32, #tpu.memory_space<vmem>>, %arg3: memref<1x4xf32, #tpu.memory_space<vmem>>, %arg4: memref<4x32xf32, #tpu.memory_space<vmem>>, %arg5: memref<1x32xf32, #tpu.memory_space<vmem>>, %arg6: memref<1x8x256xf32, #tpu.memory_space<vmem>>) attributes {dimension_semantics = [#tpu.dimension_semantics<parallel>], iteration_bounds = array<i64: 2>, scalar_prefetch = 0 : i64, scratch_operands = 0 : i64, tpu.core_type = #tpu.core_type<tc>, window_params = [{transform_indices = @transform_0, window_bounds = array<i64: 1, 8, 256>}, {pipeline_mode = #tpu.pipeline_mode<synchronous>, transform_indices = @transform_1, window_bounds = array<i64: 8, 4>}, {pipeline_mode = #tpu.pipeline_mode<synchronous>, transform_indices = @transform_2, window_bounds = array<i64: 1, 4>}, {pipeline_mode = #tpu.pipeline_mode<synchronous>, transform_indices = @transform_3, window_bounds = array<i64: 4, 32>}, {pipeline_mode = #tpu.pipeline_mode<synchronous>, transform_indices = @transform_4, window_bounds = array<i64: 1, 32>}, {transform_indices = @transform_5, window_bounds = array<i64: 1, 8, 256>}]} {
    %c0 = arith.constant 0 : index
    %c0_0 = arith.constant 0 : index
    %c0_1 = arith.constant 0 : index
    %0 = vector.load %arg1[%c0, %c0_0, %c0_1] : memref<1x8x256xf32, #tpu.memory_space<vmem>>, vector<1x8x256xf32>
    %cst = arith.constant dense<0.000000e+00> : vector<1x8xf32>
    %1 = vector.multi_reduction <add>, %0, %cst [2] : vector<1x8x256xf32> to vector<1x8xf32>
    %cst_2 = arith.constant 3.906250e-03 : f32
    %2 = vector.broadcast %cst_2 : f32 to vector<1x8xf32>
    %3 = arith.mulf %1, %2 : vector<1x8xf32>
    %c0_3 = arith.constant 0 : index
    %c0_4 = arith.constant 0 : index
    %4 = vector.load %arg2[%c0_3, %c0_4] : memref<8x4xf32, #tpu.memory_space<vmem>>, vector<8x4xf32>
    %cst_5 = arith.constant dense<0.000000e+00> : vector<1x4xf32>
    %5 = tpu.matmul %3, %4, %cst_5 {dimension_numbers = #tpu.dot_dimension_numbers<[1], [0], [0], [1], [0, 0, 1, 1], [], []>} : vector<1x8xf32>, vector<8x4xf32>, vector<1x4xf32> -> vector<1x4xf32>
    %c0_6 = arith.constant 0 : index
    %c0_7 = arith.constant 0 : index
    %6 = vector.load %arg3[%c0_6, %c0_7] : memref<1x4xf32, #tpu.memory_space<vmem>>, vector<1x4xf32>
    %7 = arith.addf %5, %6 : vector<1x4xf32>
    %cst_8 = arith.constant 0.000000e+00 : f32
    %8 = vector.broadcast %cst_8 : f32 to vector<1x4xf32>
    %9 = arith.maximumf %7, %8 : vector<1x4xf32>
    %c0_9 = arith.constant 0 : index
    %c0_10 = arith.constant 0 : index
    %10 = vector.load %arg4[%c0_9, %c0_10] : memref<4x32xf32, #tpu.memory_space<vmem>>, vector<4x32xf32>
    %cst_11 = arith.constant dense<0.000000e+00> : vector<1x32xf32>
    %11 = tpu.matmul %9, %10, %cst_11 {dimension_numbers = #tpu.dot_dimension_numbers<[1], [0], [0], [1], [0, 0, 1, 1], [], []>} : vector<1x4xf32>, vector<4x32xf32>, vector<1x32xf32> -> vector<1x32xf32>
    %c0_12 = arith.constant 0 : index
    %c0_13 = arith.constant 0 : index
    %12 = vector.load %arg5[%c0_12, %c0_13] : memref<1x32xf32, #tpu.memory_space<vmem>>, vector<1x32xf32>
    %13 = arith.addf %11, %12 : vector<1x32xf32>
    %cst_14 = arith.constant 3.000000e+00 : f32
    %14 = vector.broadcast %cst_14 : f32 to vector<1x32xf32>
    %15 = arith.addf %13, %14 : vector<1x32xf32>
    %cst_15 = arith.constant 0.000000e+00 : f32
    %cst_16 = arith.constant 6.000000e+00 : f32
    %16 = vector.broadcast %cst_15 : f32 to vector<1x32xf32>
    %17 = arith.maximumf %16, %15 : vector<1x32xf32>
    %18 = vector.broadcast %cst_16 : f32 to vector<1x32xf32>
    %19 = arith.minimumf %18, %17 : vector<1x32xf32>
    %cst_17 = arith.constant 0.166666672 : f32
    %20 = vector.broadcast %cst_17 : f32 to vector<1x32xf32>
    %21 = arith.mulf %19, %20 : vector<1x32xf32>
    %cst_18 = arith.constant 5.000000e-01 : f32
    %22 = vector.broadcast %cst_18 : f32 to vector<1x32xf32>
    %23 = arith.subf %21, %22 : vector<1x32xf32>
    %cst_19 = arith.constant 4.000000e+00 : f32
    %24 = vector.broadcast %cst_19 : f32 to vector<1x32xf32>
    %25 = arith.mulf %23, %24 : vector<1x32xf32>
    %26 = vector.shape_cast %25 : vector<1x32xf32> to vector<1x32x1xf32>
    %27 = vector.extract_strided_slice %26 {offsets = [0, 0, 0], sizes = [1, 8, 1], strides = [1, 1, 1]} : vector<1x32x1xf32> to vector<1x8x1xf32>
    %cst_20 = arith.constant 1.000000e+00 : f32
    %28 = vector.broadcast %cst_20 : f32 to vector<1x8x1xf32>
    %29 = arith.addf %27, %28 : vector<1x8x1xf32>
    %30 = vector.extract_strided_slice %26 {offsets = [0, 8, 0], sizes = [1, 8, 1], strides = [1, 1, 1]} : vector<1x32x1xf32> to vector<1x8x1xf32>
    %cst_21 = arith.constant 0.000000e+00 : f32
    %31 = vector.broadcast %cst_21 : f32 to vector<1x8x1xf32>
    %32 = arith.addf %30, %31 : vector<1x8x1xf32>
    %33 = vector.extract_strided_slice %0 {offsets = [0, 1, 0], sizes = [1, 7, 256], strides = [1, 1, 1]} : vector<1x8x256xf32> to vector<1x7x256xf32>
    %34 = vector.extract_strided_slice %0 {offsets = [0, 0, 0], sizes = [1, 1, 256], strides = [1, 1, 1]} : vector<1x8x256xf32> to vector<1x1x256xf32>
    %35 = tpu.concatenate %33, %34 in 1 : vector<1x7x256xf32>, vector<1x1x256xf32> -> vector<1x8x256xf32>
    %36 = vector.extract_strided_slice %0 {offsets = [0, 5, 0], sizes = [1, 3, 256], strides = [1, 1, 1]} : vector<1x8x256xf32> to vector<1x3x256xf32>
    %37 = vector.extract_strided_slice %0 {offsets = [0, 0, 0], sizes = [1, 5, 256], strides = [1, 1, 1]} : vector<1x8x256xf32> to vector<1x5x256xf32>
    %38 = tpu.concatenate %36, %37 in 1 : vector<1x3x256xf32>, vector<1x5x256xf32> -> vector<1x8x256xf32>
    %39 = tpu.iota {dimensions = array<i32: 0>} : vector<8x1xi32>
    %c4_i32 = arith.constant 4 : i32
    %c0_i32 = arith.constant 0 : i32
    %40 = arith.cmpi eq, %c4_i32, %c0_i32 : i32
    %c1_i32 = arith.constant 1 : i32
    %41 = arith.select %40, %c1_i32, %c4_i32 : i32
    %42 = vector.broadcast %41 : i32 to vector<8x1xi32>
    %43 = arith.remsi %39, %42 : vector<8x1xi32>
    %c0_i32_22 = arith.constant 0 : i32
    %44 = vector.broadcast %c0_i32_22 : i32 to vector<8x1xi32>
    %45 = arith.cmpi ne, %43, %44 : vector<8x1xi32>
    %c0_i32_23 = arith.constant 0 : i32
    %46 = vector.broadcast %c0_i32_23 : i32 to vector<8x1xi32>
    %47 = arith.cmpi slt, %43, %46 : vector<8x1xi32>
    %c0_i32_24 = arith.constant 0 : i32
    %48 = arith.cmpi slt, %41, %c0_i32_24 : i32
    %49 = vector.broadcast %48 : i1 to vector<8x1xi1>
    %50 = vector.broadcast %49 : vector<8x1xi1> to vector<8x1xi1>
    %51 = arith.xori %47, %50 : vector<8x1xi1>
    %52 = arith.andi %51, %45 : vector<8x1xi1>
    %53 = vector.broadcast %41 : i32 to vector<8x1xi32>
    %54 = arith.addi %43, %53 : vector<8x1xi32>
    %55 = arith.select %52, %54, %43 : vector<8x1xi1>, vector<8x1xi32>
    %c3_i32 = arith.constant 3 : i32
    %56 = vector.broadcast %c3_i32 : i32 to vector<8x1xi32>
    %57 = arith.cmpi eq, %55, %56 : vector<8x1xi32>
    %58 = vector.shape_cast %57 : vector<8x1xi1> to vector<1x8x1xi1>
    %59 = vector.broadcast %58 : vector<1x8x1xi1> to vector<1x8x256xi1>
    %60 = arith.select %59, %35, %38 : vector<1x8x256xi1>, vector<1x8x256xf32>
    %61 = vector.extract_strided_slice %26 {offsets = [0, 16, 0], sizes = [1, 8, 1], strides = [1, 1, 1]} : vector<1x32x1xf32> to vector<1x8x1xf32>
    %cst_25 = arith.constant 5.000000e-01 : f32
    %62 = vector.broadcast %cst_25 : f32 to vector<1x8x1xf32>
    %63 = arith.addf %61, %62 : vector<1x8x1xf32>
    %64 = vector.extract_strided_slice %26 {offsets = [0, 24, 0], sizes = [1, 8, 1], strides = [1, 1, 1]} : vector<1x32x1xf32> to vector<1x8x1xf32>
    %cst_26 = arith.constant 5.000000e-01 : f32
    %65 = vector.broadcast %cst_26 : f32 to vector<1x8x1xf32>
    %66 = arith.addf %64, %65 : vector<1x8x1xf32>
    %67 = vector.broadcast %29 : vector<1x8x1xf32> to vector<1x8x256xf32>
    %68 = arith.mulf %0, %67 : vector<1x8x256xf32>
    %69 = vector.broadcast %32 : vector<1x8x1xf32> to vector<1x8x256xf32>
    %70 = arith.mulf %60, %69 : vector<1x8x256xf32>
    %71 = arith.addf %68, %70 : vector<1x8x256xf32>
    %72 = vector.broadcast %63 : vector<1x8x1xf32> to vector<1x8x256xf32>
    %73 = arith.mulf %0, %72 : vector<1x8x256xf32>
    %74 = vector.broadcast %66 : vector<1x8x1xf32> to vector<1x8x256xf32>
    %75 = arith.mulf %60, %74 : vector<1x8x256xf32>
    %76 = arith.addf %73, %75 : vector<1x8x256xf32>
    %77 = arith.maximumf %71, %76 : vector<1x8x256xf32>
    %c0_27 = arith.constant 0 : index
    %c0_28 = arith.constant 0 : index
    %c0_29 = arith.constant 0 : index
    %78 = vector.load %arg6[%c0_27, %c0_28, %c0_29] : memref<1x8x256xf32, #tpu.memory_space<vmem>>, vector<1x8x256xf32>
    tpu.vector_store %arg6[%c0_27, %c0_28, %c0_29], %77 {strides = array<i32>} : memref<1x8x256xf32, #tpu.memory_space<vmem>>, vector<1x8x256xf32>,
    return
  }
  func.func @transform_0(%arg0: i32) -> (i32, i32, i32) {
    %c0_i32 = arith.constant 0 : i32
    %c0_i32_0 = arith.constant 0 : i32
    %c0_i32_1 = arith.constant 0 : i32
    return %arg0, %c0_i32, %c0_i32_0 : i32, i32, i32
  }
  func.func @transform_1(%arg0: i32) -> (i32, i32) {
    %c0_i32 = arith.constant 0 : i32
    %c0_i32_0 = arith.constant 0 : i32
    %c0_i32_1 = arith.constant 0 : i32
    return %c0_i32, %c0_i32_0 : i32, i32
  }
  func.func @transform_2(%arg0: i32) -> (i32, i32) {
    %c0_i32 = arith.constant 0 : i32
    %c0_i32_0 = arith.constant 0 : i32
    %c0_i32_1 = arith.constant 0 : i32
    return %c0_i32, %c0_i32_0 : i32, i32
  }
  func.func @transform_3(%arg0: i32) -> (i32, i32) {
    %c0_i32 = arith.constant 0 : i32
    %c0_i32_0 = arith.constant 0 : i32
    %c0_i32_1 = arith.constant 0 : i32
    return %c0_i32, %c0_i32_0 : i32, i32
  }
  func.func @transform_4(%arg0: i32) -> (i32, i32) {
    %c0_i32 = arith.constant 0 : i32
    %c0_i32_0 = arith.constant 0 : i32
    %c0_i32_1 = arith.constant 0 : i32
    return %c0_i32, %c0_i32_0 : i32, i32
  }
  func.func @transform_5(%arg0: i32) -> (i32, i32, i32) {
    %c0_i32 = arith.constant 0 : i32
    %c0_i32_0 = arith.constant 0 : i32
    %c0_i32_1 = arith.constant 0 : i32
    return %arg0, %c0_i32, %c0_i32_0 : i32, i32, i32
  }
}

</mosaic_0001>

<llo_original>
// kernel: tpu_custom_call.1
$region0: #{tpu_custom_call.1}
  #allocation0 [shape = 'u32[]', space=smem, size = 0x4, offset = 0x4, fixed_abs, tag = 'smem constant byte address 0x4 - core index']
  #allocation1 [shape = 'u32[72,128]{1,0:T(1,128)}', space=vmem, size = 0x9000, scoped, tag = 'internal scratch']
  %s0 = inlined_call_operand.hbm [shape: s32[2,8,128], index: 0, kind: input, shape index: {}]
  %s1 = inlined_call_operand.hbm [shape: s32[2,8,128], index: 1, kind: output, shape index: {}]
  %s2 = sld [smem:[#allocation0]]
  $region18: #{tpu_custom_call.1} parent=0
    _
  %s4 = ssub.s32 1, %s2
  %s5 = scalar_select 0, %s4, %s2
  $region1: #{tpu_custom_call.1} parent=0
    #allocation2 [shape = 'u8[8192]{0}', space=vmem, size = 0x2000, scoped, tag = 'input window, operand 0, single buffered']
    #allocation3 [shape = 's32[1]{0}', space=sflag, size = 0x4, scoped, tag = 'scoped memory for tpu_custom_call.1']
    #allocation4 [shape = 's32[1]{0}', space=sflag, size = 0x4, scoped, tag = 'scoped memory for tpu_custom_call.1']
    #allocation5 [shape = 'u8[8192]{0}', space=vmem, size = 0x2000, scoped, tag = 'output window, operand 0, single buffered']
    %6 = vsyncpa [#allocation3], 0
    %7 = vsyncpa [#allocation4], 0
    // Predicated region
    $region2: #{tpu_custom_call.1} parent=1 // pred_check
      _
    $region3: #{tpu_custom_call.1} parent=1 // pred_check_branch
      %9 = sbr.rel (0) target = $region5
    $region4: #{tpu_custom_call.1} parent=1 // pred_region
      %11 = vsyncadd [#allocation3], 0
      %s12 = sshll.u32 %s0, 4
      %s13 = int_to_ptr.hbm [resolvable:$true] %s12
      %s14 = sshll.u32 [#allocation2], 4
      %s15 = int_to_ptr.vmem [resolvable:$true] %s14
      %20 = dma.hbm_to_vmem [thread:$0]  %s13, 256, %s15, [#allocation3], 128, 128, 8
    $region5: #{tpu_custom_call.1} parent=1 // pred_fallthru
      _
    // Predicated region
    $region6: #{tpu_custom_call.1} parent=1 // pred_check
      _
    $region7: #{tpu_custom_call.1} parent=1 // pred_check_branch
      %22 = sbr.rel (0) target = $region9
    $region8: #{tpu_custom_call.1} parent=1 // pred_region
      %24 = dma.done [#allocation3], 256
    $region9: #{tpu_custom_call.1} parent=1 // pred_fallthru
      _
    %v25 = vld [vmem:[#allocation2] sm:$0xff]
    %v26 = vld [vmem:[#allocation2 + $0x8] sm:$0xff]
    %v27 = vrot.slane %v25, 5
    %v28 = vrot.slane %v26, 5
    %29 = vst [vmem:[#allocation5] sm:$0xff] %v27
    %30 = vst [vmem:[#allocation5 + $0x8] sm:$0xff] %v28
    // Predicated region
    $region10: #{tpu_custom_call.1} parent=1 // pred_check
      _
    $region11: #{tpu_custom_call.1} parent=1 // pred_check_branch
      %32 = sbr.rel (0) target = $region13
    $region12: #{tpu_custom_call.1} parent=1 // pred_region
      %34 = vsyncadd [#allocation4], 0
      %s35 = sshll.u32 [#allocation5], 4
      %s36 = int_to_ptr.vmem [resolvable:$true] %s35
      %s37 = sshll.u32 %s1, 4
      %s38 = int_to_ptr.hbm [resolvable:$true] %s37
      %43 = dma.vmem_to_hbm [thread:$0]  %s36, 256, %s38, [#allocation4], 128, 128, 8
    $region13: #{tpu_custom_call.1} parent=1 // pred_fallthru
      _
    // Predicated region
    $region14: #{tpu_custom_call.1} parent=1 // pred_check
      _
    $region15: #{tpu_custom_call.1} parent=1 // pred_check_branch
      %45 = sbr.rel (0) target = $region17
    $region16: #{tpu_custom_call.1} parent=1 // pred_region
      %47 = dma.done [#allocation4], 256
    $region17: #{tpu_custom_call.1} parent=1 // pred_fallthru
      _
    %48 = vsyncpa [#allocation3], 1
    %49 = vsyncpa [#allocation4], 1

// kernel: tpu_custom_call.1
$region0: #{tpu_custom_call.1}
  #allocation0 [shape = 'u32[]', space=smem, size = 0x4, offset = 0x4, fixed_abs, tag = 'smem constant byte address 0x4 - core index']
  #allocation1 [shape = 'u32[72,128]{1,0:T(1,128)}', space=vmem, size = 0x9000, scoped, tag = 'internal scratch']
  %s0 = inlined_call_operand.hbm [shape: f32[2,8,256], index: 0, kind: input, shape index: {}]
  %s1 = inlined_call_operand.vmem [shape: f32[8,4], index: 1, kind: input, shape index: {}]
  %s2 = inlined_call_operand.vmem [shape: f32[1,4], index: 2, kind: input, shape index: {}]
  %s3 = inlined_call_operand.vmem [shape: f32[4,32], index: 3, kind: input, shape index: {}]
  %s4 = inlined_call_operand.vmem [shape: f32[1,32], index: 4, kind: input, shape index: {}]
  %s5 = inlined_call_operand.hbm [shape: f32[2,8,256], index: 5, kind: output, shape index: {}]
  %s6 = sld [smem:[#allocation0]]
  $region57: #{tpu_custom_call.1} parent=0
    _
  %s8 = ssub.s32 1, %s6
  %s9 = scalar_select 0, %s8, %s6
  $region1: #{tpu_custom_call.1} parent=0
    #allocation2 [shape = 'u8[16384]{0}', space=vmem, size = 0x4000, scoped, tag = 'input window, operand 0']
    #allocation3 [shape = 's32[2]{0}', space=sflag, size = 0x8, scoped, tag = 'scoped memory for tpu_custom_call.1']
    #allocation4 [shape = 's32[2]{0}', space=sflag, size = 0x8, scoped, tag = 'scoped memory for tpu_custom_call.1']
    #allocation5 [shape = 'u8[16384]{0}', space=vmem, size = 0x4000, scoped, tag = 'output window, operand 0']
    %10 = vsyncpa [#allocation3], 0
    %s11 = scalar_lea.sflag [#allocation3], 1
    %12 = vsyncpa %s11, 0
    %13 = vsyncpa [#allocation4], 0
    %s14 = scalar_lea.sflag [#allocation4], 1
    %15 = vsyncpa %s14, 0
    loop: start=0, step=1, limit=4
    $region2: #{tpu_custom_call.1} parent=1 // loop_pre_header
      _
    $region3: #{tpu_custom_call.1} parent=1 // loop_header
      %s17 = sphi 0, %s21
      %p18 = scmp.ge.s32.totalorder %s17, 4
      %s27 = sphi 0, %s29
      %s30 = sphi 0, %s27
      %s31 = sphi 0, %s30
      %s47 = sphi 0, %s31
      %s51 = sphi 0, %s51
      %s53 = sphi 0, %s51
      %s54 = sphi 0, %s53
      %s68 = sphi 0, %s54
      %s72 = sphi 0, %s72
      %s74 = sphi 0, %s72
      %s75 = sphi 0, %s74
      %s89 = sphi 0, %s75
      %s93 = sphi 0, %s93
      %s95 = sphi 0, %s93
      %s96 = sphi 0, %s95
      %s110 = sphi 0, %s96
      %s114 = sphi 0, %s114
      %s116 = sphi 0, %s114
      %s117 = sphi 0, %s116
      %s131 = sphi 0, %s117
      %s137 = sphi 0, %s139
      %s140 = sphi 0, %s137
      %s141 = sphi 0, %s140
      %s157 = sphi 0, %s141
    $region4: #{tpu_custom_call.1} parent=1 // loop_header_branch
      %20 = sbr.rel (%p18) target = $region8
    $region5: #{tpu_custom_call.1} parent=1 // loop_body
      %s22 = ssub.s32 %s17, 1
      %s23 = ssub.s32 %s17, 2
      %s24 = sadd.s32 %s17, 1
      %s25 = ssub.s32 %s17, %s24
      %p26 = scmp.eq.s32.totalorder %s25, 0
      %s28 = sadd.s32 %s27, 1
      %s29 = scalar_select %p26, %s27, %s28
      %p32 = pneg %p26
      %p33 = scmp.eq.s32.totalorder %s17, 1
      %p34 = por %p32, %p33
      %p35 = scmp.ne.s32.totalorder %s27, %s30
      %p36 = scmp.eq.s32.totalorder %s17, 0
      %p37 = por %p35, %p36
      %p38 = scmp.ne.s32.totalorder %s27, %s30
      %p39 = scmp.eq.s32.totalorder %s22, 1
      %p40 = por %p38, %p39
      %p41 = scmp.ne.s32.totalorder %s30, %s31
      %p42 = scmp.eq.s32.totalorder %s22, 0
      %p43 = por %p41, %p42
      %p44 = scmp.ne.s32.totalorder %s30, %s31
      %p45 = scmp.eq.s32.totalorder %s23, 1
      %p46 = por %p44, %p45
      %p48 = scmp.ne.s32.totalorder %s31, %s47
      %p49 = scmp.eq.s32.totalorder %s23, 0
      %p50 = por %p48, %p49
      %s52 = sadd.s32 %s51, 1
      %p55 = scmp.eq.s32.totalorder %s17, 1
      %p56 = scmp.ne.s32.totalorder %s51, %s53
      %p57 = scmp.eq.s32.totalorder %s17, 0
      %p58 = por %p56, %p57
      %p59 = scmp.ne.s32.totalorder %s51, %s53
      %p60 = scmp.eq.s32.totalorder %s22, 1
      %p61 = por %p59, %p60
      %p62 = scmp.ne.s32.totalorder %s53, %s54
      %p63 = scmp.eq.s32.totalorder %s22, 0
      %p64 = por %p62, %p63
      %p65 = scmp.ne.s32.totalorder %s53, %s54
      %p66 = scmp.eq.s32.totalorder %s23, 1
      %p67 = por %p65, %p66
      %p69 = scmp.ne.s32.totalorder %s54, %s68
      %p70 = scmp.eq.s32.totalorder %s23, 0
      %p71 = por %p69, %p70
      %s73 = sadd.s32 %s72, 1
      %p76 = scmp.eq.s32.totalorder %s17, 1
      %p77 = scmp.ne.s32.totalorder %s72, %s74
      %p78 = scmp.eq.s32.totalorder %s17, 0
      %p79 = por %p77, %p78
      %p80 = scmp.ne.s32.totalorder %s72, %s74
      %p81 = scmp.eq.s32.totalorder %s22, 1
      %p82 = por %p80, %p81
      %p83 = scmp.ne.s32.totalorder %s74, %s75
      %p84 = scmp.eq.s32.totalorder %s22, 0
      %p85 = por %p83, %p84
      %p86 = scmp.ne.s32.totalorder %s74, %s75
      %p87 = scmp.eq.s32.totalorder %s23, 1
      %p88 = por %p86, %p87
      %p90 = scmp.ne.s32.totalorder %s75, %s89
      %p91 = scmp.eq.s32.totalorder %s23, 0
      %p92 = por %p90, %p91
      %s94 = sadd.s32 %s93, 1
      %p97 = scmp.eq.s32.totalorder %s17, 1
      %p98 = scmp.ne.s32.totalorder %s93, %s95
      %p99 = scmp.eq.s32.totalorder %s17, 0
      %p100 = por %p98, %p99
      %p101 = scmp.ne.s32.totalorder %s93, %s95
      %p102 = scmp.eq.s32.totalorder %s22, 1
      %p103 = por %p101, %p102
      %p104 = scmp.ne.s32.totalorder %s95, %s96
      %p105 = scmp.eq.s32.totalorder %s22, 0
      %p106 = por %p104, %p105
      %p107 = scmp.ne.s32.totalorder %s95, %s96
      %p108 = scmp.eq.s32.totalorder %s23, 1
      %p109 = por %p107, %p108
      %p111 = scmp.ne.s32.totalorder %s96, %s110
      %p112 = scmp.eq.s32.totalorder %s23, 0
      %p113 = por %p111, %p112
      %s115 = sadd.s32 %s114, 1
      %p118 = scmp.eq.s32.totalorder %s17, 1
      %p119 = scmp.ne.s32.totalorder %s114, %s116
      %p120 = scmp.eq.s32.totalorder %s17, 0
      %p121 = por %p119, %p120
      %p122 = scmp.ne.s32.totalorder %s114, %s116
      %p123 = scmp.eq.s32.totalorder %s22, 1
      %p124 = por %p122, %p123
      %p125 = scmp.ne.s32.totalorder %s116, %s117
      %p126 = scmp.eq.s32.totalorder %s22, 0
      %p127 = por %p125, %p126
      %p128 = scmp.ne.s32.totalorder %s116, %s117
      %p129 = scmp.eq.s32.totalorder %s23, 1
      %p130 = por %p128, %p129
      %p132 = scmp.ne.s32.totalorder %s117, %s131
      %p133 = scmp.eq.s32.totalorder %s23, 0
      %p134 = por %p132, %p133
      %s135 = ssub.s32 %s17, %s24
      %p136 = scmp.eq.s32.totalorder %s135, 0
      %s138 = sadd.s32 %s137, 1
      %s139 = scalar_select %p136, %s137, %s138
      %p142 = pneg %p136
      %p143 = scmp.eq.s32.totalorder %s17, 1
      %p144 = por %p142, %p143
      %p145 = scmp.ne.s32.totalorder %s137, %s140
      %p146 = scmp.eq.s32.totalorder %s17, 0
      %p147 = por %p145, %p146
      %p148 = scmp.ne.s32.totalorder %s137, %s140
      %p149 = scmp.eq.s32.totalorder %s22, 1
      %p150 = por %p148, %p149
      %p151 = scmp.ne.s32.totalorder %s140, %s141
      %p152 = scmp.eq.s32.totalorder %s22, 0
      %p153 = por %p151, %p152
      %p154 = scmp.ne.s32.totalorder %s140, %s141
      %p155 = scmp.eq.s32.totalorder %s23, 1
      %p156 = por %p154, %p155
      %p158 = scmp.ne.s32.totalorder %s141, %s157
      %p159 = scmp.eq.s32.totalorder %s23, 0
      %p160 = por %p158, %p159
      %p161 = scmp.le.s32.totalorder 1, %s17
      %p162 = scmp.lt.s32.totalorder %s17, 3
      %p163 = pnand %p161, %p162
      %p164 = pneg %p163
      // Predicated region
      $region9: #{tpu_custom_call.1} parent=5 // pred_check
        _
      $region10: #{tpu_custom_call.1} parent=5 // pred_check_branch
        %166 = sbr.rel (%p163) target = $region12
      $region11: #{tpu_custom_call.1} parent=5 // pred_region
        %s167 = ssub.s32 %s17, 1
        // Predicated region
        $region13: #{tpu_custom_call.1} parent=11 // pred_check
          %p168 = pneg %p64
        $region14: #{tpu_custom_call.1} parent=11 // pred_check_branch
          %170 = sbr.rel (%p168) target = $region16
        $region15: #{tpu_custom_call.1} parent=11 // pred_region
          _
        $region16: #{tpu_custom_call.1} parent=11 // pred_fallthru
          _
        // Predicated region
        $region17: #{tpu_custom_call.1} parent=11 // pred_check
          %p171 = pneg %p85
        $region18: #{tpu_custom_call.1} parent=11 // pred_check_branch
          %173 = sbr.rel (%p171) target = $region20
        $region19: #{tpu_custom_call.1} parent=11 // pred_region
          _
        $region20: #{tpu_custom_call.1} parent=11 // pred_fallthru
          _
        // Predicated region
        $region21: #{tpu_custom_call.1} parent=11 // pred_check
          %p174 = pneg %p106
        $region22: #{tpu_custom_call.1} parent=11 // pred_check_branch
          %176 = sbr.rel (%p174) target = $region24
        $region23: #{tpu_custom_call.1} parent=11 // pred_region
          _
        $region24: #{tpu_custom_call.1} parent=11 // pred_fallthru
          _
        // Predicated region
        $region25: #{tpu_custom_call.1} parent=11 // pred_check
          %p177 = pneg %p127
        $region26: #{tpu_custom_call.1} parent=11 // pred_check_branch
          %179 = sbr.rel (%p177) target = $region28
        $region27: #{tpu_custom_call.1} parent=11 // pred_region
          _
        $region28: #{tpu_custom_call.1} parent=11 // pred_fallthru
          _
      $region12: #{tpu_custom_call.1} parent=5 // pred_fallthru
        _
      %p180 = scmp.lt.s32.totalorder %s17, 2
      // Predicated region
      $region29: #{tpu_custom_call.1} parent=5 // pred_check
        %p181 = pneg %p180
      $region30: #{tpu_custom_call.1} parent=5 // pred_check_branch
        %183 = sbr.rel (%p181) target = $region32
      $region31: #{tpu_custom_call.1} parent=5 // pred_region
        // Predicated region
        $region33: #{tpu_custom_call.1} parent=31 // pred_check
          %p184 = pneg %p37
        $region34: #{tpu_custom_call.1} parent=31 // pred_check_branch
          %186 = sbr.rel (%p184) target = $region36
        $region35: #{tpu_custom_call.1} parent=31 // pred_region
          %s187 = sand.u32 %s27, 1
          %s188 = scalar_lea.sflag [#allocation3], %s187
          %s189 = sand.u32 %s27, 1
          %s190 = smul.addr %s189, 16
          %s191 = scalar_lea.vmem [#allocation2], %s190
          %193 = vsyncadd %s188, 0
          %s194 = smul.addr %s17, 2
          %s195 = smul.addr %s194, 8
          %s196 = scalar_lea.hbm %s0, %s195
          %s198 = sshll.u32 %s196, 4
          %s199 = int_to_ptr.hbm [resolvable:$true] %s198
          %s200 = sshll.u32 %s191, 4
          %s201 = int_to_ptr.vmem [resolvable:$true] %s200
          %203 = dma.hbm_to_vmem [thread:$0]  %s199, 256, %s201, %s188
        $region36: #{tpu_custom_call.1} parent=31 // pred_fallthru
          _
      $region32: #{tpu_custom_call.1} parent=5 // pred_fallthru
        _
      %p204 = scmp.le.s32.totalorder 1, %s17
      %p205 = scmp.lt.s32.totalorder %s17, 3
      %p206 = pnand %p204, %p205
      %p207 = pneg %p206
      // Predicated region
      $region37: #{tpu_custom_call.1} parent=5 // pred_check
        _
      $region38: #{tpu_custom_call.1} parent=5 // pred_check_branch
        %209 = sbr.rel (%p206) target = $region40
      $region39: #{tpu_custom_call.1} parent=5 // pred_region
        %s210 = ssub.s32 %s17, 1
        %s211 = sand.u32 %s30, 1
        %s212 = scalar_lea.sflag [#allocation3], %s211
        %s213 = sand.u32 %s30, 1
        %s214 = smul.addr %s213, 16
        %s215 = scalar_lea.vmem [#allocation2], %s214
        // Predicated region
        $region41: #{tpu_custom_call.1} parent=39 // pred_check
          %p216 = pneg %p43
        $region42: #{tpu_custom_call.1} parent=39 // pred_check_branch
          %218 = sbr.rel (%p216) target = $region44
        $region43: #{tpu_custom_call.1} parent=39 // pred_region
          %220 = dma.done %s212, 256
        $region44: #{tpu_custom_call.1} parent=39 // pred_fallthru
          _
        %s221 = sand.u32 %s30, 1
        %s222 = scalar_lea.sflag [#allocation3], %s221
        %s223 = sand.u32 %s30, 1
        %s224 = smul.addr %s223, 16
        %s225 = scalar_lea.vmem [#allocation2], %s224
        %p226 = pneg %p43
        %p227 = pneg %p40
        %p228 = pneg %p64
        %p229 = pneg %p61
        %p230 = pneg %p85
        %p231 = pneg %p82
        %p232 = pneg %p106
        %p233 = pneg %p103
        %p234 = pneg %p127
        %p235 = pneg %p124
        %p236 = pneg %p153
        %p237 = pneg %p150
        %s238 = sand.u32 %s140, 1
        %s239 = scalar_lea.sflag [#allocation4], %s238
        %s240 = sand.u32 %s140, 1
        %s241 = smul.addr %s240, 16
        %s242 = scalar_lea.vmem [#allocation5], %s241
        %v243 = vld [vmem:[%s215] sm:$0xff]
        %v244 = vld [vmem:[%s215 + $0x8] sm:$0xff]
        %v245 = vadd.f32 %v243, %v244
        %246 = vadd.xlane.f32.xlu0 %v245
        %v247 = vpop.xlane.xlu0 %246
        %v248 = vmul.f32 %v247, 0.00390625
        %v249 = vld [vmem:[%s1] sm:$0xff]
        %v250 = vld [vmem:[%s2] sm:$0x1]
        %v252 = vlaneseq
        %v253 = vand.u32 %v252, 127
        %v254 = vperm.slane %v248, %v253
        %vm255 = vcmask 64512
        %v256 = vsel %vm255, %v254, 0
        %258 = vmatpush.msra.mxu0 0.0
        %259 = vmatpush.msra.mxu0 0.0
        %260 = vmatpush.msra.mxu0 0.0
        %261 = vmatpush.msra.mxu0 0.0
        %262 = vmatpush.msra.mxu0 0.0
        %263 = vmatpush.msra.mxu0 0.0
        %264 = vmatpush.msra.mxu0 0.0
        %265 = vmatpush.msra.mxu0 0.0
        %266 = vmatpush.msra.mxu0 0.0
        %267 = vmatpush.msra.mxu0 0.0
        %268 = vmatpush.msra.mxu0 0.0
        %269 = vmatpush.msra.mxu0 0.0
        %270 = vmatpush.msra.mxu0 0.0
        %271 = vmatpush.msra.mxu0 0.0
        %272 = vmatpush.msra.mxu0 0.0
        %273 = vmatpush.msra.mxu0 %v249
        %274 = vmatmul.f32.gmra.mxu0 %v256
        %v275 = vpop.f32.mrf.mxu0
        %v276 = vadd.f32 %v250, %v275
        %277 = vdwg.mxu0
        %v278 = vmax.f32 %v276, 0.0
        %v279 = vld [vmem:[%s3] sm:$0xf]
        %v280 = vld [vmem:[%s4] sm:$0x1]
        %vm281 = vcmask 31744
        %v283 = vsel %vm281, %v278, 0
        %vm285 = vcmask 1043456
        %v287 = vsel %vm285, %v279, 0
        %289 = vmatpush.msra.mxu0 0.0
        %290 = vmatpush.msra.mxu0 0.0
        %291 = vmatpush.msra.mxu0 0.0
        %292 = vmatpush.msra.mxu0 0.0
        %293 = vmatpush.msra.mxu0 0.0
        %294 = vmatpush.msra.mxu0 0.0
        %295 = vmatpush.msra.mxu0 0.0
        %296 = vmatpush.msra.mxu0 0.0
        %297 = vmatpush.msra.mxu0 0.0
        %298 = vmatpush.msra.mxu0 0.0
        %299 = vmatpush.msra.mxu0 0.0
        %300 = vmatpush.msra.mxu0 0.0
        %301 = vmatpush.msra.mxu0 0.0
        %302 = vmatpush.msra.mxu0 0.0
        %303 = vmatpush.msra.mxu0 0.0
        %304 = vmatpush.msra.mxu0 %v287
        %305 = vmatmul.f32.gmra.mxu0 %v283
        %v306 = vpop.f32.mrf.mxu0
        %v307 = vadd.f32 %v280, %v306
        %308 = vdwg.mxu0
        %v309 = vadd.f32 %v307, 3.0
        %v310 = vmax.f32 %v309, 0.0
        %v311 = vmin.f32 %v310, 6.0
        %v312 = vmul.f32 %v311, 0.16666667
        %v313 = vsub.f32 %v312, 0.5
        %v314 = vmul.f32 %v313, 4.0
        %v315 = vperm.slane %v314, 0
        %v316 = vlaneseq
        %v317 = vshrl.u32 %v316, 7
        %319 = vset.pattern.permute.xlu0 %v317
        %320 = vperm.xlu0 %319, %v315
        %v321 = vpop.permute.xlu0 %320
        %v322 = vlaneseq
        %v323 = vshrl.u32 %v322, 7
        %v324 = vadd.s32 %v323, 8
        %325 = vset.pattern.permute.xlu0 %v324
        %326 = vperm.xlu0 %325, %v315
        %v327 = vpop.permute.xlu0 %326
        %v328 = vlaneseq
        %v329 = vshrl.u32 %v328, 7
        %v330 = vadd.s32 %v329, 16
        %331 = vset.pattern.permute.xlu0 %v330
        %332 = vperm.xlu0 %331, %v315
        %v333 = vpop.permute.xlu0 %332
        %v334 = vlaneseq
        %v335 = vshrl.u32 %v334, 7
        %v336 = vadd.s32 %v335, 24
        %337 = vset.pattern.permute.xlu0 %v336
        %338 = vperm.xlu0 %337, %v315
        %v339 = vpop.permute.xlu0 %338
        %v340 = vadd.f32 %v321, 1.0
        %v341 = vadd.f32 %v327, 0.0
        %v344 = vrot.slane %v243, 1
        %v345 = vrot.slane %v244, 1
        %vm348 = vcmask 1046528
        %v349 = vsel %vm348, %v344, %v344
        %v350 = vsel %vm348, %v345, %v345
        %v351 = vrot.slane %v243, 5
        %v352 = vrot.slane %v244, 5
        %vm355 = vcmask 1042432
        %v356 = vsel %vm355, %v351, %v351
        %v357 = vsel %vm355, %v352, %v352
        %v358 = vlaneseq
        %v359 = vshrl.u32 %v358, 7
        %vm360 = vcmp.lt.s32.totalorder %v359, 0
        %v361 = vsub.s32 0, %v359
        %v362 = vsel %vm360, %v361, %v359
        %v363 = vshrl.u32 %v362, 2
        %v364 = vand.u32 %v362, 3
        %v365 = vsub.s32 0, %v364
        %v366 = vsel %vm360, %v365, %v364
        %vm367 = vcmp.ne.s32.totalorder %v366, 0
        %vm368 = vcmp.lt.s32.totalorder %v366, 0
        %vm369 = vmand %vm368, %vm367
        %v370 = vadd.s32 %v366, 4
        %v371 = vsel %vm369, %v370, %v366
        %vm372 = vcmp.eq.s32.totalorder %v371, 3
        %v373 = vsel %vm372, 1, 0
        %vm374 = vcmp.eq.s32.totalorder %v373, 1
        %v375 = vsel %vm374, %v349, %v356
        %v376 = vsel %vm374, %v350, %v357
        %v377 = vadd.f32 %v333, 0.5
        %v378 = vadd.f32 %v339, 0.5
        %v379 = vmul.f32 %v243, %v340
        %v380 = vmul.f32 %v244, %v340
        %v381 = vmul.f32 %v375, %v341
        %v382 = vmul.f32 %v376, %v341
        %v383 = vadd.f32 %v379, %v381
        %v384 = vadd.f32 %v380, %v382
        %v385 = vmul.f32 %v243, %v377
        %v386 = vmul.f32 %v244, %v377
        %v387 = vmul.f32 %v375, %v378
        %v388 = vmul.f32 %v376, %v378
        %v389 = vadd.f32 %v385, %v387
        %v390 = vadd.f32 %v386, %v388
        %v391 = vmax.f32 %v383, %v389
        %v392 = vmax.f32 %v384, %v390
        %393 = vst [vmem:[%s242] sm:$0xff] %v391
        %394 = vst [vmem:[%s242 + $0x8] sm:$0xff] %v392
        %s395 = sand.u32 %s140, 1
        %s396 = scalar_lea.sflag [#allocation4], %s395
        %s397 = sand.u32 %s140, 1
        %s398 = smul.addr %s397, 16
        %s399 = scalar_lea.vmem [#allocation5], %s398
        // Predicated region
        $region45: #{tpu_custom_call.1} parent=39 // pred_check
          %p400 = pneg %p150
        $region46: #{tpu_custom_call.1} parent=39 // pred_check_branch
          %402 = sbr.rel (%p400) target = $region48
        $region47: #{tpu_custom_call.1} parent=39 // pred_region
          %404 = vsyncadd %s396, 0
          %s405 = smul.addr %s22, 2
          %s406 = smul.addr %s405, 8
          %s407 = scalar_lea.hbm %s5, %s406
          %s409 = sshll.u32 %s399, 4
          %s410 = int_to_ptr.vmem [resolvable:$true] %s409
          %s411 = sshll.u32 %s407, 4
          %s412 = int_to_ptr.hbm [resolvable:$true] %s411
          %414 = dma.vmem_to_hbm [thread:$0]  %s410, 256, %s412, %s396
        $region48: #{tpu_custom_call.1} parent=39 // pred_fallthru
          _
      $region40: #{tpu_custom_call.1} parent=5 // pred_fallthru
        _
      %p415 = scmp.le.s32.totalorder 2, %s17
      // Predicated region
      $region49: #{tpu_custom_call.1} parent=5 // pred_check
        %p416 = pneg %p415
      $region50: #{tpu_custom_call.1} parent=5 // pred_check_branch
        %418 = sbr.rel (%p416) target = $region52
      $region51: #{tpu_custom_call.1} parent=5 // pred_region
        %s419 = ssub.s32 %s17, 2
        // Predicated region
        $region53: #{tpu_custom_call.1} parent=51 // pred_check
          %p420 = pneg %p156
        $region54: #{tpu_custom_call.1} parent=51 // pred_check_branch
          %422 = sbr.rel (%p420) target = $region56
        $region55: #{tpu_custom_call.1} parent=51 // pred_region
          %s423 = sand.u32 %s141, 1
          %s424 = scalar_lea.sflag [#allocation4], %s423
          %s425 = sand.u32 %s141, 1
          %s426 = smul.addr %s425, 16
          %s427 = scalar_lea.vmem [#allocation5], %s426
          %429 = dma.done %s424, 256
        $region56: #{tpu_custom_call.1} parent=51 // pred_fallthru
          _
      $region52: #{tpu_custom_call.1} parent=5 // pred_fallthru
        _
    $region6: #{tpu_custom_call.1} parent=1 // loop_footer
      %s21 = sadd.s32 1, %s17
    $region7: #{tpu_custom_call.1} parent=1 // loop_footer_branch
      %16 = sbr.rel target = $region3
    $region8: #{tpu_custom_call.1} parent=1 // loop_exit
      _
    %430 = vsyncpa [#allocation3], 1
    %s431 = scalar_lea.sflag [#allocation3], 1
    %432 = vsyncpa %s431, 1
    %433 = vsyncpa [#allocation4], 1
    %s434 = scalar_lea.sflag [#allocation4], 1
    %435 = vsyncpa %s434, 1

</llo_original>
